<compile_context>
chip_gen: v6e
topology: v6e:2x2x1
jax: 0.10.0
libtpu: 0.0.40
codegen_flags: <defaults>
</compile_context>

<pallas_src>
import jax
import jax.numpy as jnp
from jax.experimental import pallas as pl
from jax.experimental.pallas import tpu as pltpu


def mlp_kernel(x_ref, w1_ref, b1_ref, w2_ref, b2_ref,
               w3_ref, b3_ref, w4_ref, b4_ref, o_ref):
    cd = w1_ref.dtype  # MXU feed dtype (bf16 by default)

    def layer(h, w_ref, b_ref):
        # MXU matmul with f32 accumulation; bias add stays f32 on the VPU.
        return jnp.dot(h, w_ref[...], preferred_element_type=jnp.float32) + b_ref[...]

    h = layer(x_ref[...], w1_ref, b1_ref)
    h = jnp.maximum(h, 0.0).astype(cd)   # ReLU in f32, cast only for next MXU feed
    h = layer(h, w2_ref, b2_ref)
    h = jnp.maximum(h, 0.0).astype(cd)
    h = layer(h, w3_ref, b3_ref)
    h = jnp.maximum(h, 0.0).astype(cd)
    logits = layer(h, w4_ref, b4_ref)    # f32
    # bf16 store: halves the dominant (output-writeback) HBM stream.
    o_ref[...] = jax.nn.sigmoid(logits).astype(o_ref.dtype)


def pack_params(params, compute_dtype=jnp.bfloat16):
    """One-time parameter packing (hoisted out of the per-call path).

    Casts weights to the MXU feed dtype, biases to f32, and pads fc4 (weight
    and bias) up to a multiple of 128 output columns so the kernel writes a
    lane-dense slab (unmasked vst + clean writeback DMA)."""
    (w1, b1), (w2, b2), (w3, b3), (w4, b4) = params
    C = int(w4.shape[1])
    C_pad = pl.cdiv(C, 128) * 128
    w4p = jnp.zeros((w4.shape[0], C_pad), w4.dtype).at[:, :C].set(w4)
    b4p = jnp.zeros((1, C_pad), jnp.float32).at[:, :C].set(
        b4.astype(jnp.float32).reshape(1, -1))
    ws = tuple(w.astype(compute_dtype) for w in (w1, w2, w3, w4p))
    bs = tuple(b.astype(jnp.float32).reshape(1, -1) for b in (b1, b2, b3)) + (b4p,)
    return {"ws": ws, "bs": bs, "num_classes": C}


def _choose_block_b(B):
    """Batch tile: whole batch when small (latency-bound, single step);
    otherwise >= 2 steps (so both v7x TensorCores get work) with tiles up to
    2048 rows, preferring a multiple of 16 that divides B exactly so the input
    never needs a padded copy."""
    if B <= 256:
        return B
    target = min(2048, -(-B // 2))          # ceil(B/2), capped at 2048 rows
    lo = max(128, (3 * target) // 4)        # never shrink into sliver tiles
    cand = (target // 16) * 16
    while cand >= lo:
        if B % cand == 0:
            return cand
        cand -= 16
    return -(-target // 16) * 16            # no clean divisor: pad final tile


def _vmem_cap_bytes():
    """Generation-aware cap for the VMEM budget (v7x: 64 MiB; v5e/v6e: 128 MiB)."""
    try:
        cap = int(pltpu.get_tpu_info().vmem_capacity_bytes)
    except Exception:
        cap = 64 * 1024 * 1024              # conservative: v7x per-TensorCore VMEM
    return max(16 * 1024 * 1024, (cap * 55) // 100)


def mlp_forward(x, packed, *, block_b=None):
    """Fused MLP forward. x: (B, num_features). Returns (B, num_classes) f32."""
    ws, bs, C = packed["ws"], packed["bs"], packed["num_classes"]
    B, F = x.shape
    C_pad = ws[-1].shape[1]
    compute_dtype = ws[0].dtype

    # --- batch tiling -----------------------------------------------------
    if block_b is None:
        block_b = _choose_block_b(B)
    block_b = min(block_b, B)
    if block_b != B:
        assert block_b % 16 == 0, \
            "block_b must be a multiple of 16 when tiling (bf16 sublane packing)"
    B_pad = pl.cdiv(B, block_b) * block_b

    xk = x.astype(compute_dtype)
    if B_pad != B:
        # Only reached when no clean divisor tile exists (costs one pass over x).
        xk = jnp.zeros((B_pad, F), compute_dtype).at[:B].set(xk)

    # Weights/biases: constant index_map -> VMEM-resident across all batch tiles.
    def rep(a):
        return pl.BlockSpec(a.shape, lambda i, _nd=a.ndim: (0,) * _nd)

    in_specs = [pl.BlockSpec((block_b, F), lambda i: (i, 0))]
    operands = [xk]
    for w, b in zip(ws, bs):
        in_specs += [rep(w), rep(b)]
        operands += [w, b]

    # --- VMEM budget derived from actual tile/param sizes, capped per chip ---
    itemsize = jnp.dtype(compute_dtype).itemsize
    h_widths = tuple(int(w.shape[1]) for w in ws)
    est = 2 * (sum(int(w.size) * w.dtype.itemsize for w in ws)
               + sum(int(b.size) * b.dtype.itemsize for b in bs))     # params
    est += 2 * block_b * (F + C_pad) * itemsize                       # x / out tiles
    est += block_b * sum(h_widths) * 4                                # f32 intermediates
    vmem_limit = int(min(max(2 * est, 16 * 1024 * 1024), _vmem_cap_bytes()))

    out_pad = pl.pallas_call(
        mlp_kernel,
        out_shape=jax.ShapeDtypeStruct((B_pad, C_pad), compute_dtype),
        grid_spec=pltpu.PrefetchScalarGridSpec(
            num_scalar_prefetch=0,
            grid=(B_pad // block_b,),
            in_specs=in_specs,
            out_specs=pl.BlockSpec((block_b, C_pad), lambda i: (i, 0)),
        ),
        compiler_params=pltpu.CompilerParams(
            dimension_semantics=("parallel",),
            vmem_limit_bytes=vmem_limit),
    )(*operands)

    # Keep mlp_forward jitted together with its consumer so this slice/cast fuses.
    return out_pad[:B, :C].astype(jnp.float32)


def init_linear(key, in_features, out_features):
    """Deterministic init mirroring nn.Linear defaults: U(-1/sqrt(in), 1/sqrt(in))."""
    kw, kb = jax.random.split(key)
    bound = 1.0 / (in_features ** 0.5)
    w = jax.random.uniform(kw, (in_features, out_features), jnp.float32,
                           minval=-bound, maxval=bound)
    b = jax.random.uniform(kb, (1, out_features), jnp.float32,
                           minval=-bound, maxval=bound)
    return w, b


if __name__ == "__main__":
    # Small shapes consistent with the module (hidden_dim = module default 128).
    num_features = 32
    num_classes = 8
    hidden_dim = 128
    batch = 16

    key = jax.random.PRNGKey(0)
    kx, k1, k2, k3, k4 = jax.random.split(key, 5)

    x = jax.random.normal(kx, (batch, num_features), jnp.float32)

    params = (
        init_linear(k1, num_features, hidden_dim),
        init_linear(k2, hidden_dim, 2 * hidden_dim),
        init_linear(k3, 2 * hidden_dim, hidden_dim),
        init_linear(k4, hidden_dim, num_classes),
    )

    packed = pack_params(params)                        # one-time weight prep (hoisted)
    fwd = jax.jit(lambda xb: mlp_forward(xb, packed))   # packed params -> jit-time constants
    out = jax.block_until_ready(fwd(x))

    # Reference matching the kernel's numerics (bf16 MXU feed, f32 math, bf16 store).
    h = x.astype(jnp.bfloat16)
    for idx, (w, b) in enumerate(params):
        h = jnp.dot(h, w.astype(jnp.bfloat16), preferred_element_type=jnp.float32) + b
        if idx < 3:
            h = jnp.maximum(h, 0.0).astype(jnp.bfloat16)
    ref = jax.nn.sigmoid(h).astype(jnp.bfloat16).astype(jnp.float32)

    # Pure-f32 reference (eval-mode dropout = identity): coarse sanity check of the
    # bf16-feed approximation against the original f32 PyTorch module.
    hf = x
    for idx, (w, b) in enumerate(params):
        hf = hf @ w + b
        if idx < 3:
            hf = jnp.maximum(hf, 0.0)
    ref_f32 = jax.nn.sigmoid(hf)

    assert out.shape == (batch, num_classes)
    assert jnp.allclose(out, ref, atol=5e-3, rtol=5e-3), \
        float(jnp.max(jnp.abs(out - ref)))
    assert jnp.allclose(out, ref_f32, atol=5e-2), \
        float(jnp.max(jnp.abs(out - ref_f32)))

    print("KERNEL_OK")
</pallas_src>

<mosaic_0001>
module attributes {stable_mosaic.version = 11 : i64} {
  func.func @mlp_kernel(%arg0: i32, %arg1: memref<16x32xbf16, #tpu.memory_space<vmem>>, %arg2: memref<32x128xbf16, #tpu.memory_space<vmem>>, %arg3: memref<1x128xf32, #tpu.memory_space<vmem>>, %arg4: memref<128x256xbf16, #tpu.memory_space<vmem>>, %arg5: memref<1x256xf32, #tpu.memory_space<vmem>>, %arg6: memref<256x128xbf16, #tpu.memory_space<vmem>>, %arg7: memref<1x128xf32, #tpu.memory_space<vmem>>, %arg8: memref<128x128xbf16, #tpu.memory_space<vmem>>, %arg9: memref<1x128xf32, #tpu.memory_space<vmem>>, %arg10: memref<16x128xbf16, #tpu.memory_space<vmem>>) attributes {dimension_semantics = [#tpu.dimension_semantics<parallel>], iteration_bounds = array<i64: 1>, scalar_prefetch = 0 : i64, scratch_operands = 0 : i64, tpu.core_type = #tpu.core_type<tc>, window_params = [{transform_indices = @transform_0, window_bounds = array<i64: 16, 32>}, {pipeline_mode = #tpu.pipeline_mode<synchronous>, transform_indices = @transform_1, window_bounds = array<i64: 32, 128>}, {pipeline_mode = #tpu.pipeline_mode<synchronous>, transform_indices = @transform_2, window_bounds = array<i64: 1, 128>}, {pipeline_mode = #tpu.pipeline_mode<synchronous>, transform_indices = @transform_3, window_bounds = array<i64: 128, 256>}, {pipeline_mode = #tpu.pipeline_mode<synchronous>, transform_indices = @transform_4, window_bounds = array<i64: 1, 256>}, {pipeline_mode = #tpu.pipeline_mode<synchronous>, transform_indices = @transform_5, window_bounds = array<i64: 256, 128>}, {pipeline_mode = #tpu.pipeline_mode<synchronous>, transform_indices = @transform_6, window_bounds = array<i64: 1, 128>}, {pipeline_mode = #tpu.pipeline_mode<synchronous>, transform_indices = @transform_7, window_bounds = array<i64: 128, 128>}, {pipeline_mode = #tpu.pipeline_mode<synchronous>, transform_indices = @transform_8, window_bounds = array<i64: 1, 128>}, {transform_indices = @transform_9, window_bounds = array<i64: 16, 128>}]} {
    %c0 = arith.constant 0 : index
    %c0_0 = arith.constant 0 : index
    %0 = vector.load %arg1[%c0, %c0_0] : memref<16x32xbf16, #tpu.memory_space<vmem>>, vector<16x32xbf16>
    %c0_1 = arith.constant 0 : index
    %c0_2 = arith.constant 0 : index
    %1 = vector.load %arg2[%c0_1, %c0_2] : memref<32x128xbf16, #tpu.memory_space<vmem>>, vector<32x128xbf16>
    %cst = arith.constant dense<0.000000e+00> : vector<16x128xf32>
    %2 = tpu.matmul %0, %1, %cst {dimension_numbers = #tpu.dot_dimension_numbers<[1], [0], [0], [1], [0, 0, 1, 1], [], []>} : vector<16x32xbf16>, vector<32x128xbf16>, vector<16x128xf32> -> vector<16x128xf32>
    %c0_3 = arith.constant 0 : index
    %c0_4 = arith.constant 0 : index
    %3 = vector.load %arg3[%c0_3, %c0_4] : memref<1x128xf32, #tpu.memory_space<vmem>>, vector<1x128xf32>
    %4 = vector.broadcast %3 : vector<1x128xf32> to vector<16x128xf32>
    %5 = arith.addf %2, %4 : vector<16x128xf32>
    %cst_5 = arith.constant 0.000000e+00 : f32
    %6 = vector.broadcast %cst_5 : f32 to vector<16x128xf32>
    %7 = arith.maximumf %5, %6 : vector<16x128xf32>
    %8 = arith.truncf %7 : vector<16x128xf32> to vector<16x128xbf16>
    %c0_6 = arith.constant 0 : index
    %c0_7 = arith.constant 0 : index
    %9 = vector.load %arg4[%c0_6, %c0_7] : memref<128x256xbf16, #tpu.memory_space<vmem>>, vector<128x256xbf16>
    %cst_8 = arith.constant dense<0.000000e+00> : vector<16x256xf32>
    %10 = tpu.matmul %8, %9, %cst_8 {dimension_numbers = #tpu.dot_dimension_numbers<[1], [0], [0], [1], [0, 0, 1, 1], [], []>} : vector<16x128xbf16>, vector<128x256xbf16>, vector<16x256xf32> -> vector<16x256xf32>
    %c0_9 = arith.constant 0 : index
    %c0_10 = arith.constant 0 : index
    %11 = vector.load %arg5[%c0_9, %c0_10] : memref<1x256xf32, #tpu.memory_space<vmem>>, vector<1x256xf32>
    %12 = vector.broadcast %11 : vector<1x256xf32> to vector<16x256xf32>
    %13 = arith.addf %10, %12 : vector<16x256xf32>
    %cst_11 = arith.constant 0.000000e+00 : f32
    %14 = vector.broadcast %cst_11 : f32 to vector<16x256xf32>
    %15 = arith.maximumf %13, %14 : vector<16x256xf32>
    %16 = arith.truncf %15 : vector<16x256xf32> to vector<16x256xbf16>
    %c0_12 = arith.constant 0 : index
    %c0_13 = arith.constant 0 : index
    %17 = vector.load %arg6[%c0_12, %c0_13] : memref<256x128xbf16, #tpu.memory_space<vmem>>, vector<256x128xbf16>
    %cst_14 = arith.constant dense<0.000000e+00> : vector<16x128xf32>
    %18 = tpu.matmul %16, %17, %cst_14 {dimension_numbers = #tpu.dot_dimension_numbers<[1], [0], [0], [1], [0, 0, 1, 1], [], []>} : vector<16x256xbf16>, vector<256x128xbf16>, vector<16x128xf32> -> vector<16x128xf32>
    %c0_15 = arith.constant 0 : index
    %c0_16 = arith.constant 0 : index
    %19 = vector.load %arg7[%c0_15, %c0_16] : memref<1x128xf32, #tpu.memory_space<vmem>>, vector<1x128xf32>
    %20 = vector.broadcast %19 : vector<1x128xf32> to vector<16x128xf32>
    %21 = arith.addf %18, %20 : vector<16x128xf32>
    %cst_17 = arith.constant 0.000000e+00 : f32
    %22 = vector.broadcast %cst_17 : f32 to vector<16x128xf32>
    %23 = arith.maximumf %21, %22 : vector<16x128xf32>
    %24 = arith.truncf %23 : vector<16x128xf32> to vector<16x128xbf16>
    %c0_18 = arith.constant 0 : index
    %c0_19 = arith.constant 0 : index
    %25 = vector.load %arg8[%c0_18, %c0_19] : memref<128x128xbf16, #tpu.memory_space<vmem>>, vector<128x128xbf16>
    %cst_20 = arith.constant dense<0.000000e+00> : vector<16x128xf32>
    %26 = tpu.matmul %24, %25, %cst_20 {dimension_numbers = #tpu.dot_dimension_numbers<[1], [0], [0], [1], [0, 0, 1, 1], [], []>} : vector<16x128xbf16>, vector<128x128xbf16>, vector<16x128xf32> -> vector<16x128xf32>
    %c0_21 = arith.constant 0 : index
    %c0_22 = arith.constant 0 : index
    %27 = vector.load %arg9[%c0_21, %c0_22] : memref<1x128xf32, #tpu.memory_space<vmem>>, vector<1x128xf32>
    %28 = vector.broadcast %27 : vector<1x128xf32> to vector<16x128xf32>
    %29 = arith.addf %26, %28 : vector<16x128xf32>
    %30 = arith.negf %29 : vector<16x128xf32>
    %31 = math.exp %30 : vector<16x128xf32>
    %cst_23 = arith.constant 1.000000e+00 : f32
    %32 = vector.broadcast %cst_23 : f32 to vector<16x128xf32>
    %33 = arith.addf %32, %31 : vector<16x128xf32>
    %34 = arith.divf %32, %33 : vector<16x128xf32>
    %35 = arith.truncf %34 : vector<16x128xf32> to vector<16x128xbf16>
    %c0_24 = arith.constant 0 : index
    %c0_25 = arith.constant 0 : index
    %36 = vector.load %arg10[%c0_24, %c0_25] : memref<16x128xbf16, #tpu.memory_space<vmem>>, vector<16x128xbf16>
    tpu.vector_store %arg10[%c0_24, %c0_25], %35 {strides = array<i32>} : memref<16x128xbf16, #tpu.memory_space<vmem>>, vector<16x128xbf16>,
    return
  }
  func.func @transform_0(%arg0: i32) -> (i32, i32) {
    %c0_i32 = arith.constant 0 : i32
    %c0_i32_0 = arith.constant 0 : i32
    return %arg0, %c0_i32 : i32, i32
  }
  func.func @transform_1(%arg0: i32) -> (i32, i32) {
    %c0_i32 = arith.constant 0 : i32
    %c0_i32_0 = arith.constant 0 : i32
    %c0_i32_1 = arith.constant 0 : i32
    return %c0_i32, %c0_i32_0 : i32, i32
  }
  func.func @transform_2(%arg0: i32) -> (i32, i32) {
    %c0_i32 = arith.constant 0 : i32
    %c0_i32_0 = arith.constant 0 : i32
    %c0_i32_1 = arith.constant 0 : i32
    return %c0_i32, %c0_i32_0 : i32, i32
  }
  func.func @transform_3(%arg0: i32) -> (i32, i32) {
    %c0_i32 = arith.constant 0 : i32
    %c0_i32_0 = arith.constant 0 : i32
    %c0_i32_1 = arith.constant 0 : i32
    return %c0_i32, %c0_i32_0 : i32, i32
  }
  func.func @transform_4(%arg0: i32) -> (i32, i32) {
    %c0_i32 = arith.constant 0 : i32
    %c0_i32_0 = arith.constant 0 : i32
    %c0_i32_1 = arith.constant 0 : i32
    return %c0_i32, %c0_i32_0 : i32, i32
  }
  func.func @transform_5(%arg0: i32) -> (i32, i32) {
    %c0_i32 = arith.constant 0 : i32
    %c0_i32_0 = arith.constant 0 : i32
    %c0_i32_1 = arith.constant 0 : i32
    return %c0_i32, %c0_i32_0 : i32, i32
  }
  func.func @transform_6(%arg0: i32) -> (i32, i32) {
    %c0_i32 = arith.constant 0 : i32
    %c0_i32_0 = arith.constant 0 : i32
    %c0_i32_1 = arith.constant 0 : i32
    return %c0_i32, %c0_i32_0 : i32, i32
  }
  func.func @transform_7(%arg0: i32) -> (i32, i32) {
    %c0_i32 = arith.constant 0 : i32
    %c0_i32_0 = arith.constant 0 : i32
    %c0_i32_1 = arith.constant 0 : i32
    return %c0_i32, %c0_i32_0 : i32, i32
  }
  func.func @transform_8(%arg0: i32) -> (i32, i32) {
    %c0_i32 = arith.constant 0 : i32
    %c0_i32_0 = arith.constant 0 : i32
    %c0_i32_1 = arith.constant 0 : i32
    return %c0_i32, %c0_i32_0 : i32, i32
  }
  func.func @transform_9(%arg0: i32) -> (i32, i32) {
    %c0_i32 = arith.constant 0 : i32
    %c0_i32_0 = arith.constant 0 : i32
    return %arg0, %c0_i32 : i32, i32
  }
}

</mosaic_0001>

<llo_original>
// kernel: _lambda_.1
$region0: #{_lambda_.1}
  #allocation0 [shape = 'u32[]', space=smem, size = 0x4, offset = 0x4, fixed_abs, tag = 'smem constant byte address 0x4 - core index']
  #allocation1 [shape = 'u32[144,128]{1,0:T(1,128)}', space=vmem, size = 0x12000, scoped, tag = 'internal scratch']
  %s0 = inlined_call_operand.vmem [shape: bf16[16,32], index: 0, kind: input, shape index: {}]
  %s1 = inlined_call_operand.vmem [shape: bf16[32,128], index: 1, kind: input, shape index: {}]
  %s2 = inlined_call_operand.vmem [shape: f32[1,128], index: 2, kind: input, shape index: {}]
  %s3 = inlined_call_operand.hbm [shape: bf16[128,256], index: 3, kind: input, shape index: {}]
  %s4 = inlined_call_operand.vmem [shape: f32[1,256], index: 4, kind: input, shape index: {}]
  %s5 = inlined_call_operand.hbm [shape: bf16[256,128], index: 5, kind: input, shape index: {}]
  %s6 = inlined_call_operand.vmem [shape: f32[1,128], index: 6, kind: input, shape index: {}]
  %s7 = inlined_call_operand.hbm [shape: bf16[128,128], index: 7, kind: input, shape index: {}]
  %s8 = inlined_call_operand.vmem [shape: f32[1,128], index: 8, kind: input, shape index: {}]
  %s9 = inlined_call_operand.vmem [shape: bf16[16,128], index: 9, kind: output, shape index: {}]
  %s10 = sld [smem:[#allocation0]]
  $region58: #{_lambda_.1} parent=0
    _
  %s12 = ssub.s32 1, %s10
  %s13 = scalar_select 0, %s12, %s10
  $region1: #{_lambda_.1} parent=0
    #allocation2 [shape = 'u8[65536]{0}', space=vmem, size = 0x10000, scoped, tag = 'input window, operand 3, single buffered']
    #allocation3 [shape = 's32[1]{0}', space=sflag, size = 0x4, scoped, tag = 'scoped memory for _lambda_.1']
    #allocation4 [shape = 'u8[65536]{0}', space=vmem, size = 0x10000, scoped, tag = 'input window, operand 5, single buffered']
    #allocation5 [shape = 's32[1]{0}', space=sflag, size = 0x4, scoped, tag = 'scoped memory for _lambda_.1']
    #allocation6 [shape = 'u8[32768]{0}', space=vmem, size = 0x8000, scoped, tag = 'input window, operand 7, single buffered']
    %14 = vsyncpa [#allocation3], 0
    %15 = vsyncpa [#allocation5], 0
    // Predicated region
    $region2: #{_lambda_.1} parent=1 // pred_check
      _
    $region3: #{_lambda_.1} parent=1 // pred_check_branch
      %17 = sbr.rel (0) target = $region5
    $region4: #{_lambda_.1} parent=1 // pred_region
      _
    $region5: #{_lambda_.1} parent=1 // pred_fallthru
      _
    // Predicated region
    $region6: #{_lambda_.1} parent=1 // pred_check
      _
    $region7: #{_lambda_.1} parent=1 // pred_check_branch
      %19 = sbr.rel (0) target = $region9
    $region8: #{_lambda_.1} parent=1 // pred_region
      _
    $region9: #{_lambda_.1} parent=1 // pred_fallthru
      _
    // Predicated region
    $region10: #{_lambda_.1} parent=1 // pred_check
      _
    $region11: #{_lambda_.1} parent=1 // pred_check_branch
      %21 = sbr.rel (0) target = $region13
    $region12: #{_lambda_.1} parent=1 // pred_region
      _
    $region13: #{_lambda_.1} parent=1 // pred_fallthru
      _
    // Predicated region
    $region14: #{_lambda_.1} parent=1 // pred_check
      _
    $region15: #{_lambda_.1} parent=1 // pred_check_branch
      %23 = sbr.rel (0) target = $region17
    $region16: #{_lambda_.1} parent=1 // pred_region
      %s25 = ssub.s32 2048, 2048
      %26 = vsyncadd [#allocation3], %s25
      %s27 = sshll.u32 [#allocation2], 4
      %s28 = int_to_ptr.vmem [resolvable:$true] %s27
      %33 = dma.hbm_to_vmem [thread:$0]  %s3, 2048, %s28, [#allocation3], 128, 128, 8
    $region17: #{_lambda_.1} parent=1 // pred_fallthru
      _
    // Predicated region
    $region18: #{_lambda_.1} parent=1 // pred_check
      _
    $region19: #{_lambda_.1} parent=1 // pred_check_branch
      %35 = sbr.rel (0) target = $region21
    $region20: #{_lambda_.1} parent=1 // pred_region
      _
    $region21: #{_lambda_.1} parent=1 // pred_fallthru
      _
    // Predicated region
    $region22: #{_lambda_.1} parent=1 // pred_check
      _
    $region23: #{_lambda_.1} parent=1 // pred_check_branch
      %37 = sbr.rel (0) target = $region25
    $region24: #{_lambda_.1} parent=1 // pred_region
      %s39 = ssub.s32 2048, 2048
      %40 = vsyncadd [#allocation5], %s39
      %s41 = sshll.u32 [#allocation4], 4
      %s42 = int_to_ptr.vmem [resolvable:$true] %s41
      %47 = dma.hbm_to_vmem [thread:$0]  %s5, 2048, %s42, [#allocation5], 64, 64, 4
    $region25: #{_lambda_.1} parent=1 // pred_fallthru
      _
    // Predicated region
    $region26: #{_lambda_.1} parent=1 // pred_check
      _
    $region27: #{_lambda_.1} parent=1 // pred_check_branch
      %49 = sbr.rel (0) target = $region29
    $region28: #{_lambda_.1} parent=1 // pred_region
      _
    $region29: #{_lambda_.1} parent=1 // pred_fallthru
      _
    // Predicated region
    $region30: #{_lambda_.1} parent=1 // pred_check
      _
    $region31: #{_lambda_.1} parent=1 // pred_check_branch
      %51 = sbr.rel (0) target = $region33
    $region32: #{_lambda_.1} parent=1 // pred_region
      %s53 = ssub.s32 1024, 1024
      %54 = vsyncadd [#allocation5], %s53
      %s55 = sshll.u32 [#allocation6], 4
      %s56 = int_to_ptr.vmem [resolvable:$true] %s55
      %61 = dma.hbm_to_vmem [thread:$0]  %s7, 1024, %s56, [#allocation5], 64, 64, 4
    $region33: #{_lambda_.1} parent=1 // pred_fallthru
      _
    // Predicated region
    $region34: #{_lambda_.1} parent=1 // pred_check
      _
    $region35: #{_lambda_.1} parent=1 // pred_check_branch
      %63 = sbr.rel (0) target = $region37
    $region36: #{_lambda_.1} parent=1 // pred_region
      _
    $region37: #{_lambda_.1} parent=1 // pred_fallthru
      _
    // Predicated region
    $region38: #{_lambda_.1} parent=1 // pred_check
      _
    $region39: #{_lambda_.1} parent=1 // pred_check_branch
      %65 = sbr.rel (0) target = $region41
    $region40: #{_lambda_.1} parent=1 // pred_region
      %66 = dma.done [#allocation3], 2048
    $region41: #{_lambda_.1} parent=1 // pred_fallthru
      _
    // Predicated region
    $region42: #{_lambda_.1} parent=1 // pred_check
      _
    $region43: #{_lambda_.1} parent=1 // pred_check_branch
      %68 = sbr.rel (0) target = $region45
    $region44: #{_lambda_.1} parent=1 // pred_region
      %69 = dma.done [#allocation5], 2048
    $region45: #{_lambda_.1} parent=1 // pred_fallthru
      _
    // Predicated region
    $region46: #{_lambda_.1} parent=1 // pred_check
      _
    $region47: #{_lambda_.1} parent=1 // pred_check_branch
      %71 = sbr.rel (0) target = $region49
    $region48: #{_lambda_.1} parent=1 // pred_region
      %72 = dma.done [#allocation5], 1024
    $region49: #{_lambda_.1} parent=1 // pred_fallthru
      _
    %v74 = vld [vmem:[%s0] sm:$0xf]
    %v75 = vld [vmem:[%s0 + $0x4] sm:$0xf]
    %v76 = vld [vmem:[%s1] sm:$0xf]
    %v77 = vld [vmem:[%s1 + $0x4] sm:$0xf]
    %v78 = vld [vmem:[%s1 + $0x8] sm:$0xf]
    %v79 = vld [vmem:[%s1 + $0xc] sm:$0xf]
    %v80 = vld [vmem:[%s2] sm:$0x1]
    %v82 = vlaneseq
    %v83 = vshrl.u32 %v82, 7
    %v84 = vsub.s32 0, %v83
    %v85 = vrot.slane %v80, %v84
    %v89 = vunpack.c.l.b16 %v74
    %v90 = vunpack.c.l.b16 %v75
    %v91 = vpack.c.b16 %v90, %v89
    %v96 = vunpack.c.l.b16 %v76
    %v97 = vunpack.c.l.b16 %v77
    %v98 = vunpack.c.l.b16 %v78
    %v99 = vunpack.c.l.b16 %v79
    %v100 = vpack.c.b16 %v97, %v96
    %v101 = vpack.c.b16 %v99, %v98
    %vm104 = vcmask 261120
    %v106 = vsel %vm104, %v91, 0
    %108 = vmatprep.subr.bf16.mxu0 0
    %109 = vmatpush1.bf16.msra.mxu0 0
    %110 = vmatprep.subr.bf16.mxu0 0
    %111 = vmatpush1.bf16.msra.mxu0 0
    %112 = vmatprep.subr.bf16.mxu0 0
    %113 = vmatpush1.bf16.msra.mxu0 0
    %114 = vmatprep.subr.bf16.mxu0 0
    %115 = vmatpush1.bf16.msra.mxu0 0
    %116 = vmatprep.subr.bf16.mxu0 0
    %117 = vmatpush1.bf16.msra.mxu0 0
    %118 = vmatprep.subr.bf16.mxu0 0
    %119 = vmatpush1.bf16.msra.mxu0 0
    %120 = vmatprep.subr.bf16.mxu0 0
    %121 = vmatpush1.bf16.msra.mxu0 %v101
    %122 = vmatprep.subr.bf16.mxu0 0
    %123 = vmatpush1.bf16.msra.mxu0 %v100
    %124 = vmatprep.subr.bf16.mxu0 0
    %125 = vmatpush2.bf16.msra.mxu0 0
    %126 = vmatprep.subr.bf16.mxu0 0
    %127 = vmatpush2.bf16.msra.mxu0 0
    %128 = vmatprep.subr.bf16.mxu0 0
    %129 = vmatpush2.bf16.msra.mxu0 0
    %130 = vmatprep.subr.bf16.mxu0 0
    %131 = vmatpush2.bf16.msra.mxu0 0
    %132 = vmatprep.subr.bf16.mxu0 0
    %133 = vmatpush2.bf16.msra.mxu0 0
    %134 = vmatprep.subr.bf16.mxu0 0
    %135 = vmatpush2.bf16.msra.mxu0 0
    %136 = vmatprep.subr.bf16.mxu0 0
    %137 = vmatpush2.bf16.msra.mxu0 0
    %138 = vmatprep.subr.bf16.mxu0 0
    %139 = vmatpush2.bf16.msra.mxu0 0
    %140 = vmatprep.mubr.bf16.mxu0 0
    %141 = vmatmul.mubr.bf16.gmra.mxu0 %v106
    %v142 = vpop.f32.mrf.mxu0
    %v143 = vadd.f32 %v85, %v142
    %v144 = vpop.f32.mrf.mxu0
    %v145 = vpop.f32.mrf.mxu0
    %v146 = vadd.f32 %v85, %v145
    %v147 = vpop.f32.mrf.mxu0
    %148 = vdwg.mxu0
    %v149 = vmax.f32 %v143, 0.0
    %v150 = vmax.f32 %v146, 0.0
    %v151 = vpack.c.bf16 %v150, %v149
    %v152 = vld [vmem:[#allocation2] sm:$0xff]
    %v153 = vld [vmem:[#allocation2 + $0x8] sm:$0xff]
    %v154 = vld [vmem:[#allocation2 + $0x10] sm:$0xff]
    %v155 = vld [vmem:[#allocation2 + $0x18] sm:$0xff]
    %v156 = vld [vmem:[#allocation2 + $0x20] sm:$0xff]
    %v157 = vld [vmem:[#allocation2 + $0x28] sm:$0xff]
    %v158 = vld [vmem:[#allocation2 + $0x30] sm:$0xff]
    %v159 = vld [vmem:[#allocation2 + $0x38] sm:$0xff]
    %v160 = vld [vmem:[#allocation2 + $0x40] sm:$0xff]
    %v161 = vld [vmem:[#allocation2 + $0x48] sm:$0xff]
    %v162 = vld [vmem:[#allocation2 + $0x50] sm:$0xff]
    %v163 = vld [vmem:[#allocation2 + $0x58] sm:$0xff]
    %v164 = vld [vmem:[#allocation2 + $0x60] sm:$0xff]
    %v165 = vld [vmem:[#allocation2 + $0x68] sm:$0xff]
    %v166 = vld [vmem:[#allocation2 + $0x70] sm:$0xff]
    %v167 = vld [vmem:[#allocation2 + $0x78] sm:$0xff]
    %v168 = vld [vmem:[%s4] sm:$0x3]
    %v170 = vlaneseq
    %v171 = vshrl.u32 %v170, 7
    %v172 = vsub.s32 0, %v171
    %v173 = vrot.slane %v168, %v172
    %v174 = vlaneseq
    %v175 = vshrl.u32 %v174, 7
    %v176 = vsub.s32 1, %v175
    %v177 = vrot.slane %v168, %v176
    %v196 = vunpack.c.l.b16 %v152
    %v197 = vunpack.c.h.b16 %v152
    %v198 = vunpack.c.l.b16 %v153
    %v199 = vunpack.c.h.b16 %v153
    %v200 = vunpack.c.l.b16 %v154
    %v201 = vunpack.c.h.b16 %v154
    %v202 = vunpack.c.l.b16 %v155
    %v203 = vunpack.c.h.b16 %v155
    %v204 = vunpack.c.l.b16 %v156
    %v205 = vunpack.c.h.b16 %v156
    %v206 = vunpack.c.l.b16 %v157
    %v207 = vunpack.c.h.b16 %v157
    %v208 = vunpack.c.l.b16 %v158
    %v209 = vunpack.c.h.b16 %v158
    %v210 = vunpack.c.l.b16 %v159
    %v211 = vunpack.c.h.b16 %v159
    %v212 = vunpack.c.l.b16 %v160
    %v213 = vunpack.c.h.b16 %v160
    %v214 = vunpack.c.l.b16 %v161
    %v215 = vunpack.c.h.b16 %v161
    %v216 = vunpack.c.l.b16 %v162
    %v217 = vunpack.c.h.b16 %v162
    %v218 = vunpack.c.l.b16 %v163
    %v219 = vunpack.c.h.b16 %v163
    %v220 = vunpack.c.l.b16 %v164
    %v221 = vunpack.c.h.b16 %v164
    %v222 = vunpack.c.l.b16 %v165
    %v223 = vunpack.c.h.b16 %v165
    %v224 = vunpack.c.l.b16 %v166
    %v225 = vunpack.c.h.b16 %v166
    %v226 = vunpack.c.l.b16 %v167
    %v227 = vunpack.c.h.b16 %v167
    %v228 = vpack.c.b16 %v198, %v196
    %v229 = vpack.c.b16 %v199, %v197
    %v230 = vpack.c.b16 %v202, %v200
    %v231 = vpack.c.b16 %v203, %v201
    %v232 = vpack.c.b16 %v206, %v204
    %v233 = vpack.c.b16 %v207, %v205
    %v234 = vpack.c.b16 %v210, %v208
    %v235 = vpack.c.b16 %v211, %v209
    %v236 = vpack.c.b16 %v214, %v212
    %v237 = vpack.c.b16 %v215, %v213
    %v238 = vpack.c.b16 %v218, %v216
    %v239 = vpack.c.b16 %v219, %v217
    %v240 = vpack.c.b16 %v222, %v220
    %v241 = vpack.c.b16 %v223, %v221
    %v242 = vpack.c.b16 %v226, %v224
    %v243 = vpack.c.b16 %v227, %v225
    %260 = vmatprep.subr.bf16.mxu0 %v243
    %261 = vmatpush1.bf16.msra.mxu0 %v242
    %262 = vmatprep.subr.bf16.mxu0 %v241
    %263 = vmatpush1.bf16.msra.mxu0 %v240
    %264 = vmatprep.subr.bf16.mxu0 %v239
    %265 = vmatpush1.bf16.msra.mxu0 %v238
    %266 = vmatprep.subr.bf16.mxu0 %v237
    %267 = vmatpush1.bf16.msra.mxu0 %v236
    %268 = vmatprep.subr.bf16.mxu0 %v235
    %269 = vmatpush1.bf16.msra.mxu0 %v234
    %270 = vmatprep.subr.bf16.mxu0 %v233
    %271 = vmatpush1.bf16.msra.mxu0 %v232
    %272 = vmatprep.subr.bf16.mxu0 %v231
    %273 = vmatpush1.bf16.msra.mxu0 %v230
    %274 = vmatprep.subr.bf16.mxu0 %v229
    %275 = vmatpush1.bf16.msra.mxu0 %v228
    %276 = vmatprep.subr.bf16.mxu0 0
    %277 = vmatpush2.bf16.msra.mxu0 0
    %278 = vmatprep.subr.bf16.mxu0 0
    %279 = vmatpush2.bf16.msra.mxu0 0
    %280 = vmatprep.subr.bf16.mxu0 0
    %281 = vmatpush2.bf16.msra.mxu0 0
    %282 = vmatprep.subr.bf16.mxu0 0
    %283 = vmatpush2.bf16.msra.mxu0 0
    %284 = vmatprep.subr.bf16.mxu0 0
    %285 = vmatpush2.bf16.msra.mxu0 0
    %286 = vmatprep.subr.bf16.mxu0 0
    %287 = vmatpush2.bf16.msra.mxu0 0
    %288 = vmatprep.subr.bf16.mxu0 0
    %289 = vmatpush2.bf16.msra.mxu0 0
    %290 = vmatprep.subr.bf16.mxu0 0
    %291 = vmatpush2.bf16.msra.mxu0 0
    %292 = vmatprep.mubr.bf16.mxu0 0
    %293 = vmatmul.mubr.bf16.gmra.mxu0 %v151
    %v294 = vpop.f32.mrf.mxu0
    %v295 = vadd.f32 %v173, %v294
    %v296 = vpop.f32.mrf.mxu0
    %v297 = vadd.f32 %v177, %v296
    %v298 = vpop.f32.mrf.mxu0
    %v299 = vadd.f32 %v173, %v298
    %v300 = vpop.f32.mrf.mxu0
    %v301 = vadd.f32 %v177, %v300
    %302 = vdwg.mxu0
    %v303 = vmax.f32 %v295, 0.0
    %v304 = vmax.f32 %v297, 0.0
    %v305 = vmax.f32 %v299, 0.0
    %v306 = vmax.f32 %v301, 0.0
    %v307 = vpack.c.bf16 %v305, %v303
    %v308 = vpack.c.bf16 %v306, %v304
    %v309 = vld [vmem:[#allocation4] sm:$0xf]
    %v310 = vld [vmem:[#allocation4 + $0x4] sm:$0xf]
    %v311 = vld [vmem:[#allocation4 + $0x8] sm:$0xf]
    %v312 = vld [vmem:[#allocation4 + $0xc] sm:$0xf]
    %v313 = vld [vmem:[#allocation4 + $0x10] sm:$0xf]
    %v314 = vld [vmem:[#allocation4 + $0x14] sm:$0xf]
    %v315 = vld [vmem:[#allocation4 + $0x18] sm:$0xf]
    %v316 = vld [vmem:[#allocation4 + $0x1c] sm:$0xf]
    %v317 = vld [vmem:[#allocation4 + $0x20] sm:$0xf]
    %v318 = vld [vmem:[#allocation4 + $0x24] sm:$0xf]
    %v319 = vld [vmem:[#allocation4 + $0x28] sm:$0xf]
    %v320 = vld [vmem:[#allocation4 + $0x2c] sm:$0xf]
    %v321 = vld [vmem:[#allocation4 + $0x30] sm:$0xf]
    %v322 = vld [vmem:[#allocation4 + $0x34] sm:$0xf]
    %v323 = vld [vmem:[#allocation4 + $0x38] sm:$0xf]
    %v324 = vld [vmem:[#allocation4 + $0x3c] sm:$0xf]
    %v325 = vld [vmem:[#allocation4 + $0x40] sm:$0xf]
    %v326 = vld [vmem:[#allocation4 + $0x44] sm:$0xf]
    %v327 = vld [vmem:[#allocation4 + $0x48] sm:$0xf]
    %v328 = vld [vmem:[#allocation4 + $0x4c] sm:$0xf]
    %v329 = vld [vmem:[#allocation4 + $0x50] sm:$0xf]
    %v330 = vld [vmem:[#allocation4 + $0x54] sm:$0xf]
    %v331 = vld [vmem:[#allocation4 + $0x58] sm:$0xf]
    %v332 = vld [vmem:[#allocation4 + $0x5c] sm:$0xf]
    %v333 = vld [vmem:[#allocation4 + $0x60] sm:$0xf]
    %v334 = vld [vmem:[#allocation4 + $0x64] sm:$0xf]
    %v335 = vld [vmem:[#allocation4 + $0x68] sm:$0xf]
    %v336 = vld [vmem:[#allocation4 + $0x6c] sm:$0xf]
    %v337 = vld [vmem:[#allocation4 + $0x70] sm:$0xf]
    %v338 = vld [vmem:[#allocation4 + $0x74] sm:$0xf]
    %v339 = vld [vmem:[#allocation4 + $0x78] sm:$0xf]
    %v340 = vld [vmem:[#allocation4 + $0x7c] sm:$0xf]
    %v341 = vld [vmem:[%s6] sm:$0x1]
    %v343 = vlaneseq
    %v344 = vshrl.u32 %v343, 7
    %v345 = vsub.s32 0, %v344
    %v346 = vrot.slane %v341, %v345
    %v380 = vunpack.c.l.b16 %v309
    %v381 = vunpack.c.l.b16 %v310
    %v382 = vunpack.c.l.b16 %v311
    %v383 = vunpack.c.l.b16 %v312
    %v384 = vunpack.c.l.b16 %v313
    %v385 = vunpack.c.l.b16 %v314
    %v386 = vunpack.c.l.b16 %v315
    %v387 = vunpack.c.l.b16 %v316
    %v388 = vunpack.c.l.b16 %v317
    %v389 = vunpack.c.l.b16 %v318
    %v390 = vunpack.c.l.b16 %v319
    %v391 = vunpack.c.l.b16 %v320
    %v392 = vunpack.c.l.b16 %v321
    %v393 = vunpack.c.l.b16 %v322
    %v394 = vunpack.c.l.b16 %v323
    %v395 = vunpack.c.l.b16 %v324
    %v396 = vunpack.c.l.b16 %v325
    %v397 = vunpack.c.l.b16 %v326
    %v398 = vunpack.c.l.b16 %v327
    %v399 = vunpack.c.l.b16 %v328
    %v400 = vunpack.c.l.b16 %v329
    %v401 = vunpack.c.l.b16 %v330
    %v402 = vunpack.c.l.b16 %v331
    %v403 = vunpack.c.l.b16 %v332
    %v404 = vunpack.c.l.b16 %v333
    %v405 = vunpack.c.l.b16 %v334
    %v406 = vunpack.c.l.b16 %v335
    %v407 = vunpack.c.l.b16 %v336
    %v408 = vunpack.c.l.b16 %v337
    %v409 = vunpack.c.l.b16 %v338
    %v410 = vunpack.c.l.b16 %v339
    %v411 = vunpack.c.l.b16 %v340
    %v412 = vpack.c.b16 %v381, %v380
    %v413 = vpack.c.b16 %v383, %v382
    %v414 = vpack.c.b16 %v385, %v384
    %v415 = vpack.c.b16 %v387, %v386
    %v416 = vpack.c.b16 %v389, %v388
    %v417 = vpack.c.b16 %v391, %v390
    %v418 = vpack.c.b16 %v393, %v392
    %v419 = vpack.c.b16 %v395, %v394
    %v420 = vpack.c.b16 %v397, %v396
    %v421 = vpack.c.b16 %v399, %v398
    %v422 = vpack.c.b16 %v401, %v400
    %v423 = vpack.c.b16 %v403, %v402
    %v424 = vpack.c.b16 %v405, %v404
    %v425 = vpack.c.b16 %v407, %v406
    %v426 = vpack.c.b16 %v409, %v408
    %v427 = vpack.c.b16 %v411, %v410
    %444 = vmatprep.subr.bf16.mxu0 0
    %445 = vmatpush1.bf16.msra.mxu0 %v419
    %446 = vmatprep.subr.bf16.mxu0 0
    %447 = vmatpush1.bf16.msra.mxu0 %v418
    %448 = vmatprep.subr.bf16.mxu0 0
    %449 = vmatpush1.bf16.msra.mxu0 %v417
    %450 = vmatprep.subr.bf16.mxu0 0
    %451 = vmatpush1.bf16.msra.mxu0 %v416
    %452 = vmatprep.subr.bf16.mxu0 0
    %453 = vmatpush1.bf16.msra.mxu0 %v415
    %454 = vmatprep.subr.bf16.mxu0 0
    %455 = vmatpush1.bf16.msra.mxu0 %v414
    %456 = vmatprep.subr.bf16.mxu0 0
    %457 = vmatpush1.bf16.msra.mxu0 %v413
    %458 = vmatprep.subr.bf16.mxu0 0
    %459 = vmatpush1.bf16.msra.mxu0 %v412
    %460 = vmatprep.subr.bf16.mxu0 0
    %461 = vmatpush2.bf16.msra.mxu0 %v427
    %462 = vmatprep.subr.bf16.mxu0 0
    %463 = vmatpush2.bf16.msra.mxu0 %v426
    %464 = vmatprep.subr.bf16.mxu0 0
    %465 = vmatpush2.bf16.msra.mxu0 %v425
    %466 = vmatprep.subr.bf16.mxu0 0
    %467 = vmatpush2.bf16.msra.mxu0 %v424
    %468 = vmatprep.subr.bf16.mxu0 0
    %469 = vmatpush2.bf16.msra.mxu0 %v423
    %470 = vmatprep.subr.bf16.mxu0 0
    %471 = vmatpush2.bf16.msra.mxu0 %v422
    %472 = vmatprep.subr.bf16.mxu0 0
    %473 = vmatpush2.bf16.msra.mxu0 %v421
    %474 = vmatprep.subr.bf16.mxu0 0
    %475 = vmatpush2.bf16.msra.mxu0 %v420
    %476 = vmatprep.mubr.bf16.mxu0 %v308
    %477 = vmatmul.mubr.bf16.gmra.mxu0 %v307
    %v478 = vpop.f32.mrf.mxu0
    %v479 = vadd.f32 %v346, %v478
    %v480 = vpop.f32.mrf.mxu0
    %v481 = vpop.f32.mrf.mxu0
    %v482 = vadd.f32 %v346, %v481
    %v483 = vpop.f32.mrf.mxu0
    %484 = vdwg.mxu0
    %v485 = vmax.f32 %v479, 0.0
    %v486 = vmax.f32 %v482, 0.0
    %v487 = vpack.c.bf16 %v486, %v485
    %v488 = vld [vmem:[#allocation6] sm:$0xf]
    %v489 = vld [vmem:[#allocation6 + $0x4] sm:$0xf]
    %v490 = vld [vmem:[#allocation6 + $0x8] sm:$0xf]
    %v491 = vld [vmem:[#allocation6 + $0xc] sm:$0xf]
    %v492 = vld [vmem:[#allocation6 + $0x10] sm:$0xf]
    %v493 = vld [vmem:[#allocation6 + $0x14] sm:$0xf]
    %v494 = vld [vmem:[#allocation6 + $0x18] sm:$0xf]
    %v495 = vld [vmem:[#allocation6 + $0x1c] sm:$0xf]
    %v496 = vld [vmem:[#allocation6 + $0x20] sm:$0xf]
    %v497 = vld [vmem:[#allocation6 + $0x24] sm:$0xf]
    %v498 = vld [vmem:[#allocation6 + $0x28] sm:$0xf]
    %v499 = vld [vmem:[#allocation6 + $0x2c] sm:$0xf]
    %v500 = vld [vmem:[#allocation6 + $0x30] sm:$0xf]
    %v501 = vld [vmem:[#allocation6 + $0x34] sm:$0xf]
    %v502 = vld [vmem:[#allocation6 + $0x38] sm:$0xf]
    %v503 = vld [vmem:[#allocation6 + $0x3c] sm:$0xf]
    %v504 = vld [vmem:[%s8] sm:$0x1]
    %v506 = vlaneseq
    %v507 = vshrl.u32 %v506, 7
    %v508 = vsub.s32 0, %v507
    %v509 = vrot.slane %v504, %v508
    %v527 = vunpack.c.l.b16 %v488
    %v528 = vunpack.c.l.b16 %v489
    %v529 = vunpack.c.l.b16 %v490
    %v530 = vunpack.c.l.b16 %v491
    %v531 = vunpack.c.l.b16 %v492
    %v532 = vunpack.c.l.b16 %v493
    %v533 = vunpack.c.l.b16 %v494
    %v534 = vunpack.c.l.b16 %v495
    %v535 = vunpack.c.l.b16 %v496
    %v536 = vunpack.c.l.b16 %v497
    %v537 = vunpack.c.l.b16 %v498
    %v538 = vunpack.c.l.b16 %v499
    %v539 = vunpack.c.l.b16 %v500
    %v540 = vunpack.c.l.b16 %v501
    %v541 = vunpack.c.l.b16 %v502
    %v542 = vunpack.c.l.b16 %v503
    %v543 = vpack.c.b16 %v528, %v527
    %v544 = vpack.c.b16 %v530, %v529
    %v545 = vpack.c.b16 %v532, %v531
    %v546 = vpack.c.b16 %v534, %v533
    %v547 = vpack.c.b16 %v536, %v535
    %v548 = vpack.c.b16 %v538, %v537
    %v549 = vpack.c.b16 %v540, %v539
    %v550 = vpack.c.b16 %v542, %v541
    %559 = vmatprep.subr.bf16.mxu0 0
    %560 = vmatpush1.bf16.msra.mxu0 %v550
    %561 = vmatprep.subr.bf16.mxu0 0
    %562 = vmatpush1.bf16.msra.mxu0 %v549
    %563 = vmatprep.subr.bf16.mxu0 0
    %564 = vmatpush1.bf16.msra.mxu0 %v548
    %565 = vmatprep.subr.bf16.mxu0 0
    %566 = vmatpush1.bf16.msra.mxu0 %v547
    %567 = vmatprep.subr.bf16.mxu0 0
    %568 = vmatpush1.bf16.msra.mxu0 %v546
    %569 = vmatprep.subr.bf16.mxu0 0
    %570 = vmatpush1.bf16.msra.mxu0 %v545
    %571 = vmatprep.subr.bf16.mxu0 0
    %572 = vmatpush1.bf16.msra.mxu0 %v544
    %573 = vmatprep.subr.bf16.mxu0 0
    %574 = vmatpush1.bf16.msra.mxu0 %v543
    %575 = vmatprep.subr.bf16.mxu0 0
    %576 = vmatpush2.bf16.msra.mxu0 0
    %577 = vmatprep.subr.bf16.mxu0 0
    %578 = vmatpush2.bf16.msra.mxu0 0
    %579 = vmatprep.subr.bf16.mxu0 0
    %580 = vmatpush2.bf16.msra.mxu0 0
    %581 = vmatprep.subr.bf16.mxu0 0
    %582 = vmatpush2.bf16.msra.mxu0 0
    %583 = vmatprep.subr.bf16.mxu0 0
    %584 = vmatpush2.bf16.msra.mxu0 0
    %585 = vmatprep.subr.bf16.mxu0 0
    %586 = vmatpush2.bf16.msra.mxu0 0
    %587 = vmatprep.subr.bf16.mxu0 0
    %588 = vmatpush2.bf16.msra.mxu0 0
    %589 = vmatprep.subr.bf16.mxu0 0
    %590 = vmatpush2.bf16.msra.mxu0 0
    %591 = vmatprep.mubr.bf16.mxu0 0
    %592 = vmatmul.mubr.bf16.gmra.mxu0 %v487
    %v593 = vpop.f32.mrf.mxu0
    %v594 = vadd.f32 %v509, %v593
    %v595 = vpop.f32.mrf.mxu0
    %v596 = vpop.f32.mrf.mxu0
    %v597 = vadd.f32 %v509, %v596
    %v598 = vpop.f32.mrf.mxu0
    %599 = vdwg.mxu0
    %v600 = vxor.u32 %v594, 2147483648
    %v601 = vxor.u32 %v597, 2147483648
    %v602 = vmul.f32 %v600, 1.442695
    %v603 = vpow.pop %v602
    %v604 = vmul.f32 %v601, 1.442695
    %v605 = vpow.pop %v604
    %v606 = vadd.f32 %v603, 1.0
    %v607 = vadd.f32 %v605, 1.0
    %v608 = vrcp.pop %v606
    %v609 = vmul.f32 1.0, %v608
    %v610 = vrcp.pop %v607
    %v611 = vmul.f32 1.0, %v610
    %v612 = vpack.c.bf16 %v611, %v609
    %v614 = vunpack.c.l.b16 %v612
    %v615 = vunpack.c.h.b16 %v612
    %v616 = vpack.c.b16 %v614, %v614
    %v617 = vpack.c.b16 %v615, %v615
    %620 = vst [vmem:[%s9] sm:$0xf] %v616
    %621 = vst [vmem:[%s9 + $0x4] sm:$0xf] %v617
    // Predicated region
    $region50: #{_lambda_.1} parent=1 // pred_check
      _
    $region51: #{_lambda_.1} parent=1 // pred_check_branch
      %623 = sbr.rel (0) target = $region53
    $region52: #{_lambda_.1} parent=1 // pred_region
      _
    $region53: #{_lambda_.1} parent=1 // pred_fallthru
      _
    // Predicated region
    $region54: #{_lambda_.1} parent=1 // pred_check
      _
    $region55: #{_lambda_.1} parent=1 // pred_check_branch
      %625 = sbr.rel (0) target = $region57
    $region56: #{_lambda_.1} parent=1 // pred_region
      _
    $region57: #{_lambda_.1} parent=1 // pred_fallthru
      _
    %626 = vsyncpa [#allocation3], 1
    %627 = vsyncpa [#allocation5], 1

</llo_original>
